<compile_context>
chip_gen: v5e
topology: v5e:2x2
jax: 0.10.0
libtpu: 0.0.40
codegen_flags: <defaults>
</compile_context>

<pallas_src>
import functools

import jax
import jax.numpy as jnp
from jax import lax
from jax.experimental import pallas as pl
from jax.experimental.pallas import tpu as pltpu


def _round_up(x, m):
    return (x + m - 1) // m * m


def _discriminator_deep_kernel(x_ref, w1_ref, b1_ref, gamma_ref, beta_ref,
                               mean_ref, var_ref, w2_ref, out_ref,
                               *, eps, negative_slope):
    # fc1: (TB, inc) @ (inc, H) on the MXU, f32 accumulation.
    h = jnp.dot(x_ref[...], w1_ref[...], preferred_element_type=jnp.float32)
    h = h + b1_ref[...]                                   # (1, H) broadcast over rows

    # BatchNorm1d (eval): fold into per-feature scale/shift; rsqrt runs on the EUP.
    scale = gamma_ref[...] * lax.rsqrt(var_ref[...] + eps)    # (1, H)
    shift = beta_ref[...] - mean_ref[...] * scale             # (1, H)
    h = h * scale + shift

    # LeakyReLU (PyTorch default negative_slope = 0.01).
    h = jnp.where(h >= 0.0, h, h * negative_slope)

    # fc2 (no bias): feed bf16 operands to the MXU, accumulate in f32.
    logits = jnp.dot(h.astype(w2_ref.dtype), w2_ref[...],
                     preferred_element_type=jnp.float32)
    out_ref[...] = logits.astype(out_ref.dtype)


def discriminator_deep_forward(x, w1, b1, gamma, beta, running_mean, running_var,
                               w2, *, eps=1e-5, negative_slope=0.01,
                               block_b=128, mxu_dtype=jnp.bfloat16):
    """Fused fc1 + BatchNorm1d(eval) + LeakyReLU + fc2.

    x:  (B, inc) f32
    w1: (inc, H) f32  -- fc1 weight, pre-transposed vs. PyTorch layout
    b1: (1, H)   f32
    gamma/beta/running_mean/running_var: (1, H) f32  -- BatchNorm1d parameters
    w2: (H, C)   f32  -- fc2 weight, pre-transposed vs. PyTorch layout
    """
    B, inc = x.shape
    H = w1.shape[1]
    C = w2.shape[1]

    # Lane-dense output: pad the class dim to a multiple of 128 (zero columns in w2),
    # slice back after the call -> full-width unmasked stores on the writeback path.
    C_pad = _round_up(C, 128)
    if C_pad != C:
        w2 = jnp.pad(w2, ((0, 0), (0, C_pad - C)))

    # Batch tiling: TB multiple of 8 (sublane), up to block_b (multiple of 128 for
    # large B so the MXU M-dimension stays full). Pad B so the grid divides evenly.
    TB = min(block_b, _round_up(B, 8))
    B_pad = _round_up(B, TB)
    if B_pad != B:
        x = jnp.pad(x, ((0, B_pad - B), (0, 0)))

    # bf16 MXU operands: halves weight/x HBM bytes, hits bf16 MXU rate on v5e/v6e/v7x.
    x_c = x.astype(mxu_dtype)
    w1_c = w1.astype(mxu_dtype)
    w2_c = w2.astype(mxu_dtype)

    grid = (B_pad // TB,)
    kernel = functools.partial(_discriminator_deep_kernel,
                               eps=eps, negative_slope=negative_slope)

    itemsize = jnp.dtype(mxu_dtype).itemsize
    bytes_accessed = (B_pad * inc * itemsize           # x
                      + inc * H * itemsize             # w1
                      + H * C_pad * itemsize           # w2
                      + 5 * H * 4                      # b1 + 4 BN params
                      + B_pad * C_pad * 4)             # out
    cost = pl.CostEstimate(
        flops=2 * B_pad * inc * H + 2 * B_pad * H * C_pad,
        transcendentals=grid[0] * H,
        bytes_accessed=bytes_accessed,
    )

    out = pl.pallas_call(
        kernel,
        out_shape=jax.ShapeDtypeStruct((B_pad, C_pad), jnp.float32),
        grid=grid,
        in_specs=[
            pl.BlockSpec((TB, inc), lambda i: (i, 0)),      # x: streamed per batch tile
            pl.BlockSpec((inc, H), lambda i: (0, 0)),       # w1: VMEM-resident
            pl.BlockSpec((1, H), lambda i: (0, 0)),         # b1
            pl.BlockSpec((1, H), lambda i: (0, 0)),         # gamma
            pl.BlockSpec((1, H), lambda i: (0, 0)),         # beta
            pl.BlockSpec((1, H), lambda i: (0, 0)),         # running_mean
            pl.BlockSpec((1, H), lambda i: (0, 0)),         # running_var
            pl.BlockSpec((H, C_pad), lambda i: (0, 0)),     # w2: VMEM-resident
        ],
        out_specs=pl.BlockSpec((TB, C_pad), lambda i: (i, 0)),
        compiler_params=pltpu.CompilerParams(
            dimension_semantics=("parallel",),   # megacore-shard the batch axis (v7x)
            vmem_limit_bytes=32 << 20,           # headroom on v7x's 64 MiB VMEM
        ),
        cost_estimate=cost,
    )(x_c, w1_c, b1, gamma, beta, running_mean, running_var, w2_c)

    return out[:B, :C]


def _reference_forward(x, w1, b1, gamma, beta, mean, var, w2, *, eps=1e-5,
                       negative_slope=0.01, cast_dtype=None):
    """Pure-JAX reference. With cast_dtype it mirrors the kernel's MXU casts."""
    if cast_dtype is not None:
        xa, w1a, w2a = x.astype(cast_dtype), w1.astype(cast_dtype), w2.astype(cast_dtype)
    else:
        xa, w1a, w2a = x, w1, w2
    h = jnp.dot(xa, w1a, preferred_element_type=jnp.float32) + b1
    scale = gamma * lax.rsqrt(var + eps)
    h = h * scale + (beta - mean * scale)
    h = jnp.where(h >= 0.0, h, h * negative_slope)
    ha = h.astype(cast_dtype) if cast_dtype is not None else h
    return jnp.dot(ha, w2a, preferred_element_type=jnp.float32)


if __name__ == "__main__":
    # Small shapes consistent with the module: hidden=512, num_class=2 (module default),
    # reduced inc for a quick synthetic run.
    B, INC, HID, NUM_CLASS = 8, 256, 512, 2

    key = jax.random.PRNGKey(0)
    kx, kw1, kb1, kw2, kg, kb, km, kv = jax.random.split(key, 8)

    bound1 = 1.0 / (INC ** 0.5)
    bound2 = 1.0 / (HID ** 0.5)
    x = jax.random.normal(kx, (B, INC), dtype=jnp.float32)
    w1 = jax.random.uniform(kw1, (INC, HID), minval=-bound1, maxval=bound1, dtype=jnp.float32)
    b1 = jax.random.uniform(kb1, (1, HID), minval=-bound1, maxval=bound1, dtype=jnp.float32)
    w2 = jax.random.uniform(kw2, (HID, NUM_CLASS), minval=-bound2, maxval=bound2, dtype=jnp.float32)
    gamma = jax.random.uniform(kg, (1, HID), minval=0.5, maxval=1.5, dtype=jnp.float32)
    beta = jax.random.uniform(kb, (1, HID), minval=-0.1, maxval=0.1, dtype=jnp.float32)
    running_mean = 0.1 * jax.random.normal(km, (1, HID), dtype=jnp.float32)
    running_var = jax.random.uniform(kv, (1, HID), minval=0.5, maxval=1.5, dtype=jnp.float32)

    out = discriminator_deep_forward(x, w1, b1, gamma, beta, running_mean, running_var, w2)
    out = jax.block_until_ready(out)
    assert out.shape == (B, NUM_CLASS)

    # Strict check against a reference with identical MXU numerics (bf16 operands, f32 acc).
    ref_bf16 = _reference_forward(x, w1, b1, gamma, beta, running_mean, running_var, w2,
                                  cast_dtype=jnp.bfloat16)
    assert jnp.allclose(out, ref_bf16, atol=2e-3, rtol=2e-3), "mismatch vs bf16-matched reference"

    # Looser sanity check against the pure-f32 PyTorch-semantics reference.
    ref_f32 = _reference_forward(x, w1, b1, gamma, beta, running_mean, running_var, w2)
    assert jnp.allclose(out, ref_f32, atol=1e-1, rtol=1e-1), "mismatch vs f32 reference"

    print("KERNEL_OK")
</pallas_src>

<mosaic_0001>
module attributes {stable_mosaic.version = 11 : i64} {
  func.func @_discriminator_deep_kernel(%arg0: i32, %arg1: memref<8x256xbf16, #tpu.memory_space<vmem>>, %arg2: memref<256x512xbf16, #tpu.memory_space<vmem>>, %arg3: memref<1x512xf32, #tpu.memory_space<vmem>>, %arg4: memref<1x512xf32, #tpu.memory_space<vmem>>, %arg5: memref<1x512xf32, #tpu.memory_space<vmem>>, %arg6: memref<1x512xf32, #tpu.memory_space<vmem>>, %arg7: memref<1x512xf32, #tpu.memory_space<vmem>>, %arg8: memref<512x128xbf16, #tpu.memory_space<vmem>>, %arg9: memref<8x128xf32, #tpu.memory_space<vmem>>) attributes {dimension_semantics = [#tpu.dimension_semantics<parallel>], iteration_bounds = array<i64: 1>, scalar_prefetch = 0 : i64, scratch_operands = 0 : i64, tpu.core_type = #tpu.core_type<tc>, window_params = [{transform_indices = @transform_0, window_bounds = array<i64: 8, 256>}, {pipeline_mode = #tpu.pipeline_mode<synchronous>, transform_indices = @transform_1, window_bounds = array<i64: 256, 512>}, {pipeline_mode = #tpu.pipeline_mode<synchronous>, transform_indices = @transform_2, window_bounds = array<i64: 1, 512>}, {pipeline_mode = #tpu.pipeline_mode<synchronous>, transform_indices = @transform_3, window_bounds = array<i64: 1, 512>}, {pipeline_mode = #tpu.pipeline_mode<synchronous>, transform_indices = @transform_4, window_bounds = array<i64: 1, 512>}, {pipeline_mode = #tpu.pipeline_mode<synchronous>, transform_indices = @transform_5, window_bounds = array<i64: 1, 512>}, {pipeline_mode = #tpu.pipeline_mode<synchronous>, transform_indices = @transform_6, window_bounds = array<i64: 1, 512>}, {pipeline_mode = #tpu.pipeline_mode<synchronous>, transform_indices = @transform_7, window_bounds = array<i64: 512, 128>}, {transform_indices = @transform_8, window_bounds = array<i64: 8, 128>}]} {
    %c0 = arith.constant 0 : index
    %c0_0 = arith.constant 0 : index
    %0 = vector.load %arg1[%c0, %c0_0] : memref<8x256xbf16, #tpu.memory_space<vmem>>, vector<8x256xbf16>
    %c0_1 = arith.constant 0 : index
    %c0_2 = arith.constant 0 : index
    %1 = vector.load %arg2[%c0_1, %c0_2] : memref<256x512xbf16, #tpu.memory_space<vmem>>, vector<256x512xbf16>
    %cst = arith.constant dense<0.000000e+00> : vector<8x512xf32>
    %2 = tpu.matmul %0, %1, %cst {dimension_numbers = #tpu.dot_dimension_numbers<[1], [0], [0], [1], [0, 0, 1, 1], [], []>} : vector<8x256xbf16>, vector<256x512xbf16>, vector<8x512xf32> -> vector<8x512xf32>
    %c0_3 = arith.constant 0 : index
    %c0_4 = arith.constant 0 : index
    %3 = vector.load %arg3[%c0_3, %c0_4] : memref<1x512xf32, #tpu.memory_space<vmem>>, vector<1x512xf32>
    %4 = vector.broadcast %3 : vector<1x512xf32> to vector<8x512xf32>
    %5 = arith.addf %2, %4 : vector<8x512xf32>
    %c0_5 = arith.constant 0 : index
    %c0_6 = arith.constant 0 : index
    %6 = vector.load %arg4[%c0_5, %c0_6] : memref<1x512xf32, #tpu.memory_space<vmem>>, vector<1x512xf32>
    %c0_7 = arith.constant 0 : index
    %c0_8 = arith.constant 0 : index
    %7 = vector.load %arg7[%c0_7, %c0_8] : memref<1x512xf32, #tpu.memory_space<vmem>>, vector<1x512xf32>
    %cst_9 = arith.constant 9.99999974E-6 : f32
    %8 = vector.broadcast %cst_9 : f32 to vector<1x512xf32>
    %9 = arith.addf %7, %8 : vector<1x512xf32>
    %10 = math.rsqrt %9 : vector<1x512xf32>
    %11 = arith.mulf %6, %10 : vector<1x512xf32>
    %c0_10 = arith.constant 0 : index
    %c0_11 = arith.constant 0 : index
    %12 = vector.load %arg5[%c0_10, %c0_11] : memref<1x512xf32, #tpu.memory_space<vmem>>, vector<1x512xf32>
    %c0_12 = arith.constant 0 : index
    %c0_13 = arith.constant 0 : index
    %13 = vector.load %arg6[%c0_12, %c0_13] : memref<1x512xf32, #tpu.memory_space<vmem>>, vector<1x512xf32>
    %14 = arith.mulf %13, %11 : vector<1x512xf32>
    %15 = arith.subf %12, %14 : vector<1x512xf32>
    %16 = vector.broadcast %11 : vector<1x512xf32> to vector<8x512xf32>
    %17 = arith.mulf %5, %16 : vector<8x512xf32>
    %18 = vector.broadcast %15 : vector<1x512xf32> to vector<8x512xf32>
    %19 = arith.addf %17, %18 : vector<8x512xf32>
    %cst_14 = arith.constant 0.000000e+00 : f32
    %20 = vector.broadcast %cst_14 : f32 to vector<8x512xf32>
    %21 = arith.cmpf oge, %19, %20 : vector<8x512xf32>
    %cst_15 = arith.constant 0.00999999977 : f32
    %22 = vector.broadcast %cst_15 : f32 to vector<8x512xf32>
    %23 = arith.mulf %19, %22 : vector<8x512xf32>
    %24 = arith.select %21, %19, %23 : vector<8x512xi1>, vector<8x512xf32>
    %25 = arith.truncf %24 : vector<8x512xf32> to vector<8x512xbf16>
    %c0_16 = arith.constant 0 : index
    %c0_17 = arith.constant 0 : index
    %26 = vector.load %arg8[%c0_16, %c0_17] : memref<512x128xbf16, #tpu.memory_space<vmem>>, vector<512x128xbf16>
    %cst_18 = arith.constant dense<0.000000e+00> : vector<8x128xf32>
    %27 = tpu.matmul %25, %26, %cst_18 {dimension_numbers = #tpu.dot_dimension_numbers<[1], [0], [0], [1], [0, 0, 1, 1], [], []>} : vector<8x512xbf16>, vector<512x128xbf16>, vector<8x128xf32> -> vector<8x128xf32>
    %c0_19 = arith.constant 0 : index
    %c0_20 = arith.constant 0 : index
    %28 = vector.load %arg9[%c0_19, %c0_20] : memref<8x128xf32, #tpu.memory_space<vmem>>, vector<8x128xf32>
    tpu.vector_store %arg9[%c0_19, %c0_20], %27 {strides = array<i32>} : memref<8x128xf32, #tpu.memory_space<vmem>>, vector<8x128xf32>,
    return
  }
  func.func @transform_0(%arg0: i32) -> (i32, i32) {
    %c0_i32 = arith.constant 0 : i32
    %c0_i32_0 = arith.constant 0 : i32
    return %arg0, %c0_i32 : i32, i32
  }
  func.func @transform_1(%arg0: i32) -> (i32, i32) {
    %c0_i32 = arith.constant 0 : i32
    %c0_i32_0 = arith.constant 0 : i32
    %c0_i32_1 = arith.constant 0 : i32
    return %c0_i32, %c0_i32_0 : i32, i32
  }
  func.func @transform_2(%arg0: i32) -> (i32, i32) {
    %c0_i32 = arith.constant 0 : i32
    %c0_i32_0 = arith.constant 0 : i32
    %c0_i32_1 = arith.constant 0 : i32
    return %c0_i32, %c0_i32_0 : i32, i32
  }
  func.func @transform_3(%arg0: i32) -> (i32, i32) {
    %c0_i32 = arith.constant 0 : i32
    %c0_i32_0 = arith.constant 0 : i32
    %c0_i32_1 = arith.constant 0 : i32
    return %c0_i32, %c0_i32_0 : i32, i32
  }
  func.func @transform_4(%arg0: i32) -> (i32, i32) {
    %c0_i32 = arith.constant 0 : i32
    %c0_i32_0 = arith.constant 0 : i32
    %c0_i32_1 = arith.constant 0 : i32
    return %c0_i32, %c0_i32_0 : i32, i32
  }
  func.func @transform_5(%arg0: i32) -> (i32, i32) {
    %c0_i32 = arith.constant 0 : i32
    %c0_i32_0 = arith.constant 0 : i32
    %c0_i32_1 = arith.constant 0 : i32
    return %c0_i32, %c0_i32_0 : i32, i32
  }
  func.func @transform_6(%arg0: i32) -> (i32, i32) {
    %c0_i32 = arith.constant 0 : i32
    %c0_i32_0 = arith.constant 0 : i32
    %c0_i32_1 = arith.constant 0 : i32
    return %c0_i32, %c0_i32_0 : i32, i32
  }
  func.func @transform_7(%arg0: i32) -> (i32, i32) {
    %c0_i32 = arith.constant 0 : i32
    %c0_i32_0 = arith.constant 0 : i32
    %c0_i32_1 = arith.constant 0 : i32
    return %c0_i32, %c0_i32_0 : i32, i32
  }
  func.func @transform_8(%arg0: i32) -> (i32, i32) {
    %c0_i32 = arith.constant 0 : i32
    %c0_i32_0 = arith.constant 0 : i32
    return %arg0, %c0_i32 : i32, i32
  }
}

</mosaic_0001>

<llo_original>
// kernel: tpu_custom_call.1
$region0: #{tpu_custom_call.1}
  #allocation0 [shape = 'u32[]', space=smem, size = 0x4, offset = 0x4, fixed_abs, tag = 'smem constant byte address 0x4 - core index']
  #allocation1 [shape = 'u32[72,128]{1,0:T(1,128)}', space=vmem, size = 0x9000, scoped, tag = 'internal scratch']
  %s0 = inlined_call_operand.hbm [shape: bf16[8,256], index: 0, kind: input, shape index: {}]
  %s1 = inlined_call_operand.hbm [shape: bf16[256,512], index: 1, kind: input, shape index: {}]
  %s2 = inlined_call_operand.hbm [shape: f32[1,512], index: 2, kind: input, shape index: {}]
  %s3 = inlined_call_operand.hbm [shape: f32[1,512], index: 3, kind: input, shape index: {}]
  %s4 = inlined_call_operand.hbm [shape: f32[1,512], index: 4, kind: input, shape index: {}]
  %s5 = inlined_call_operand.vmem [shape: f32[1,512], index: 5, kind: input, shape index: {}]
  %s6 = inlined_call_operand.hbm [shape: f32[1,512], index: 6, kind: input, shape index: {}]
  %s7 = inlined_call_operand.hbm [shape: bf16[512,128], index: 7, kind: input, shape index: {}]
  %s8 = inlined_call_operand.hbm [shape: f32[8,128], index: 8, kind: output, shape index: {}]
  %s9 = sld [smem:[#allocation0]]
  $region70: #{tpu_custom_call.1} parent=0
    _
  %s11 = ssub.s32 1, %s9
  %s12 = scalar_select 0, %s11, %s9
  $region1: #{tpu_custom_call.1} parent=0
    #allocation2 [shape = 'u8[4096]{0}', space=vmem, size = 0x1000, scoped, tag = 'input window, operand 0, single buffered']
    #allocation3 [shape = 's32[1]{0}', space=sflag, size = 0x4, scoped, tag = 'scoped memory for tpu_custom_call.1']
    #allocation4 [shape = 's32[1]{0}', space=sflag, size = 0x4, scoped, tag = 'scoped memory for tpu_custom_call.1']
    #allocation5 [shape = 'u8[262144]{0}', space=vmem, size = 0x40000, scoped, tag = 'input window, operand 1, single buffered']
    #allocation6 [shape = 's32[1]{0}', space=sflag, size = 0x4, scoped, tag = 'scoped memory for tpu_custom_call.1']
    #allocation7 [shape = 'u8[2048]{0}', space=vmem, size = 0x800, scoped, tag = 'input window, operand 2, single buffered']
    #allocation8 [shape = 'u8[2048]{0}', space=vmem, size = 0x800, scoped, tag = 'input window, operand 3, single buffered']
    #allocation9 [shape = 's32[1]{0}', space=sflag, size = 0x4, scoped, tag = 'scoped memory for tpu_custom_call.1']
    #allocation10 [shape = 'u8[2048]{0}', space=vmem, size = 0x800, scoped, tag = 'input window, operand 4, single buffered']
    #allocation11 [shape = 'u8[2048]{0}', space=vmem, size = 0x800, scoped, tag = 'input window, operand 6, single buffered']
    #allocation12 [shape = 's32[1]{0}', space=sflag, size = 0x4, scoped, tag = 'scoped memory for tpu_custom_call.1']
    #allocation13 [shape = 'u8[131072]{0}', space=vmem, size = 0x20000, scoped, tag = 'input window, operand 7, single buffered']
    #allocation14 [shape = 'u8[4096]{0}', space=vmem, size = 0x1000, scoped, tag = 'output window, operand 0, single buffered']
    %13 = vsyncpa [#allocation3], 0
    %14 = vsyncpa [#allocation6], 0
    %15 = vsyncpa [#allocation9], 0
    %16 = vsyncpa [#allocation12], 0
    %17 = vsyncpa [#allocation4], 0
    // Predicated region
    $region2: #{tpu_custom_call.1} parent=1 // pred_check
      _
    $region3: #{tpu_custom_call.1} parent=1 // pred_check_branch
      %19 = sbr.rel (0) target = $region5
    $region4: #{tpu_custom_call.1} parent=1 // pred_region
      %21 = vsyncadd [#allocation3], 0
      %s23 = sshll.u32 %s0, 4
      %s24 = int_to_ptr.hbm [resolvable:$true] %s23
      %s25 = sshll.u32 [#allocation2], 4
      %s26 = int_to_ptr.vmem [resolvable:$true] %s25
      %28 = dma.hbm_to_vmem [thread:$0]  %s24, 128, %s26, [#allocation3]
    $region5: #{tpu_custom_call.1} parent=1 // pred_fallthru
      _
    // Predicated region
    $region6: #{tpu_custom_call.1} parent=1 // pred_check
      _
    $region7: #{tpu_custom_call.1} parent=1 // pred_check_branch
      %30 = sbr.rel (0) target = $region9
    $region8: #{tpu_custom_call.1} parent=1 // pred_region
      %32 = vsyncadd [#allocation6], 0
      %s33 = sshll.u32 %s1, 4
      %s34 = int_to_ptr.hbm [resolvable:$true] %s33
      %s35 = sshll.u32 [#allocation5], 4
      %s36 = int_to_ptr.vmem [resolvable:$true] %s35
      %41 = dma.hbm_to_vmem [thread:$0]  %s34, 8192, %s36, [#allocation6], 256, 256, 16
    $region9: #{tpu_custom_call.1} parent=1 // pred_fallthru
      _
    // Predicated region
    $region10: #{tpu_custom_call.1} parent=1 // pred_check
      _
    $region11: #{tpu_custom_call.1} parent=1 // pred_check_branch
      %43 = sbr.rel (0) target = $region13
    $region12: #{tpu_custom_call.1} parent=1 // pred_region
      %45 = vsyncadd [#allocation6], 0
      %s47 = sshll.u32 %s2, 4
      %s48 = int_to_ptr.hbm [resolvable:$true] %s47
      %s49 = sshll.u32 [#allocation7], 4
      %s50 = int_to_ptr.vmem [resolvable:$true] %s49
      %52 = dma.hbm_to_vmem [thread:$0]  %s48, 64, %s50, [#allocation6]
    $region13: #{tpu_custom_call.1} parent=1 // pred_fallthru
      _
    // Predicated region
    $region14: #{tpu_custom_call.1} parent=1 // pred_check
      _
    $region15: #{tpu_custom_call.1} parent=1 // pred_check_branch
      %54 = sbr.rel (0) target = $region17
    $region16: #{tpu_custom_call.1} parent=1 // pred_region
      %56 = vsyncadd [#allocation9], 0
      %s58 = sshll.u32 %s3, 4
      %s59 = int_to_ptr.hbm [resolvable:$true] %s58
      %s60 = sshll.u32 [#allocation8], 4
      %s61 = int_to_ptr.vmem [resolvable:$true] %s60
      %63 = dma.hbm_to_vmem [thread:$0]  %s59, 64, %s61, [#allocation9]
    $region17: #{tpu_custom_call.1} parent=1 // pred_fallthru
      _
    // Predicated region
    $region18: #{tpu_custom_call.1} parent=1 // pred_check
      _
    $region19: #{tpu_custom_call.1} parent=1 // pred_check_branch
      %65 = sbr.rel (0) target = $region21
    $region20: #{tpu_custom_call.1} parent=1 // pred_region
      %67 = vsyncadd [#allocation9], 0
      %s69 = sshll.u32 %s4, 4
      %s70 = int_to_ptr.hbm [resolvable:$true] %s69
      %s71 = sshll.u32 [#allocation10], 4
      %s72 = int_to_ptr.vmem [resolvable:$true] %s71
      %74 = dma.hbm_to_vmem [thread:$0]  %s70, 64, %s72, [#allocation9]
    $region21: #{tpu_custom_call.1} parent=1 // pred_fallthru
      _
    // Predicated region
    $region22: #{tpu_custom_call.1} parent=1 // pred_check
      _
    $region23: #{tpu_custom_call.1} parent=1 // pred_check_branch
      %76 = sbr.rel (0) target = $region25
    $region24: #{tpu_custom_call.1} parent=1 // pred_region
      _
    $region25: #{tpu_custom_call.1} parent=1 // pred_fallthru
      _
    // Predicated region
    $region26: #{tpu_custom_call.1} parent=1 // pred_check
      _
    $region27: #{tpu_custom_call.1} parent=1 // pred_check_branch
      %78 = sbr.rel (0) target = $region29
    $region28: #{tpu_custom_call.1} parent=1 // pred_region
      %80 = vsyncadd [#allocation12], 0
      %s82 = sshll.u32 %s6, 4
      %s83 = int_to_ptr.hbm [resolvable:$true] %s82
      %s84 = sshll.u32 [#allocation11], 4
      %s85 = int_to_ptr.vmem [resolvable:$true] %s84
      %87 = dma.hbm_to_vmem [thread:$0]  %s83, 64, %s85, [#allocation12]
    $region29: #{tpu_custom_call.1} parent=1 // pred_fallthru
      _
    // Predicated region
    $region30: #{tpu_custom_call.1} parent=1 // pred_check
      _
    $region31: #{tpu_custom_call.1} parent=1 // pred_check_branch
      %89 = sbr.rel (0) target = $region33
    $region32: #{tpu_custom_call.1} parent=1 // pred_region
      %91 = vsyncadd [#allocation12], 0
      %s92 = sshll.u32 %s7, 4
      %s93 = int_to_ptr.hbm [resolvable:$true] %s92
      %s94 = sshll.u32 [#allocation13], 4
      %s95 = int_to_ptr.vmem [resolvable:$true] %s94
      %100 = dma.hbm_to_vmem [thread:$0]  %s93, 4096, %s95, [#allocation12], 64, 64, 4
    $region33: #{tpu_custom_call.1} parent=1 // pred_fallthru
      _
    // Predicated region
    $region34: #{tpu_custom_call.1} parent=1 // pred_check
      _
    $region35: #{tpu_custom_call.1} parent=1 // pred_check_branch
      %102 = sbr.rel (0) target = $region37
    $region36: #{tpu_custom_call.1} parent=1 // pred_region
      %104 = dma.done [#allocation3], 128
    $region37: #{tpu_custom_call.1} parent=1 // pred_fallthru
      _
    // Predicated region
    $region38: #{tpu_custom_call.1} parent=1 // pred_check
      _
    $region39: #{tpu_custom_call.1} parent=1 // pred_check_branch
      %106 = sbr.rel (0) target = $region41
    $region40: #{tpu_custom_call.1} parent=1 // pred_region
      %108 = dma.done [#allocation6], 8192
    $region41: #{tpu_custom_call.1} parent=1 // pred_fallthru
      _
    // Predicated region
    $region42: #{tpu_custom_call.1} parent=1 // pred_check
      _
    $region43: #{tpu_custom_call.1} parent=1 // pred_check_branch
      %110 = sbr.rel (0) target = $region45
    $region44: #{tpu_custom_call.1} parent=1 // pred_region
      %112 = dma.done [#allocation6], 64
    $region45: #{tpu_custom_call.1} parent=1 // pred_fallthru
      _
    // Predicated region
    $region46: #{tpu_custom_call.1} parent=1 // pred_check
      _
    $region47: #{tpu_custom_call.1} parent=1 // pred_check_branch
      %114 = sbr.rel (0) target = $region49
    $region48: #{tpu_custom_call.1} parent=1 // pred_region
      %116 = dma.done [#allocation9], 64
    $region49: #{tpu_custom_call.1} parent=1 // pred_fallthru
      _
    // Predicated region
    $region50: #{tpu_custom_call.1} parent=1 // pred_check
      _
    $region51: #{tpu_custom_call.1} parent=1 // pred_check_branch
      %118 = sbr.rel (0) target = $region53
    $region52: #{tpu_custom_call.1} parent=1 // pred_region
      %120 = dma.done [#allocation9], 64
    $region53: #{tpu_custom_call.1} parent=1 // pred_fallthru
      _
    // Predicated region
    $region54: #{tpu_custom_call.1} parent=1 // pred_check
      _
    $region55: #{tpu_custom_call.1} parent=1 // pred_check_branch
      %122 = sbr.rel (0) target = $region57
    $region56: #{tpu_custom_call.1} parent=1 // pred_region
      %124 = dma.done [#allocation12], 64
    $region57: #{tpu_custom_call.1} parent=1 // pred_fallthru
      _
    // Predicated region
    $region58: #{tpu_custom_call.1} parent=1 // pred_check
      _
    $region59: #{tpu_custom_call.1} parent=1 // pred_check_branch
      %126 = sbr.rel (0) target = $region61
    $region60: #{tpu_custom_call.1} parent=1 // pred_region
      %128 = dma.done [#allocation12], 4096
    $region61: #{tpu_custom_call.1} parent=1 // pred_fallthru
      _
    %v129 = vld [vmem:[#allocation2] sm:$0xff]
    %v130 = vld [vmem:[#allocation5] sm:$0xff]
    %v131 = vld [vmem:[#allocation5 + $0x8] sm:$0xff]
    %v132 = vld [vmem:[#allocation5 + $0x10] sm:$0xff]
    %v133 = vld [vmem:[#allocation5 + $0x18] sm:$0xff]
    %v134 = vld [vmem:[#allocation5 + $0x20] sm:$0xff]
    %v135 = vld [vmem:[#allocation5 + $0x28] sm:$0xff]
    %v136 = vld [vmem:[#allocation5 + $0x30] sm:$0xff]
    %v137 = vld [vmem:[#allocation5 + $0x38] sm:$0xff]
    %v138 = vld [vmem:[#allocation5 + $0x40] sm:$0xff]
    %v139 = vld [vmem:[#allocation5 + $0x48] sm:$0xff]
    %v140 = vld [vmem:[#allocation5 + $0x50] sm:$0xff]
    %v141 = vld [vmem:[#allocation5 + $0x58] sm:$0xff]
    %v142 = vld [vmem:[#allocation5 + $0x60] sm:$0xff]
    %v143 = vld [vmem:[#allocation5 + $0x68] sm:$0xff]
    %v144 = vld [vmem:[#allocation5 + $0x70] sm:$0xff]
    %v145 = vld [vmem:[#allocation5 + $0x78] sm:$0xff]
    %v146 = vld [vmem:[#allocation5 + $0x80] sm:$0xff]
    %v147 = vld [vmem:[#allocation5 + $0x88] sm:$0xff]
    %v148 = vld [vmem:[#allocation5 + $0x90] sm:$0xff]
    %v149 = vld [vmem:[#allocation5 + $0x98] sm:$0xff]
    %v150 = vld [vmem:[#allocation5 + $0xa0] sm:$0xff]
    %v151 = vld [vmem:[#allocation5 + $0xa8] sm:$0xff]
    %v152 = vld [vmem:[#allocation5 + $0xb0] sm:$0xff]
    %v153 = vld [vmem:[#allocation5 + $0xb8] sm:$0xff]
    %v154 = vld [vmem:[#allocation5 + $0xc0] sm:$0xff]
    %v155 = vld [vmem:[#allocation5 + $0xc8] sm:$0xff]
    %v156 = vld [vmem:[#allocation5 + $0xd0] sm:$0xff]
    %v157 = vld [vmem:[#allocation5 + $0xd8] sm:$0xff]
    %v158 = vld [vmem:[#allocation5 + $0xe0] sm:$0xff]
    %v159 = vld [vmem:[#allocation5 + $0xe8] sm:$0xff]
    %v160 = vld [vmem:[#allocation5 + $0xf0] sm:$0xff]
    %v161 = vld [vmem:[#allocation5 + $0xf8] sm:$0xff]
    %v162 = vld [vmem:[#allocation5 + $0x100] sm:$0xff]
    %v163 = vld [vmem:[#allocation5 + $0x108] sm:$0xff]
    %v164 = vld [vmem:[#allocation5 + $0x110] sm:$0xff]
    %v165 = vld [vmem:[#allocation5 + $0x118] sm:$0xff]
    %v166 = vld [vmem:[#allocation5 + $0x120] sm:$0xff]
    %v167 = vld [vmem:[#allocation5 + $0x128] sm:$0xff]
    %v168 = vld [vmem:[#allocation5 + $0x130] sm:$0xff]
    %v169 = vld [vmem:[#allocation5 + $0x138] sm:$0xff]
    %v170 = vld [vmem:[#allocation5 + $0x140] sm:$0xff]
    %v171 = vld [vmem:[#allocation5 + $0x148] sm:$0xff]
    %v172 = vld [vmem:[#allocation5 + $0x150] sm:$0xff]
    %v173 = vld [vmem:[#allocation5 + $0x158] sm:$0xff]
    %v174 = vld [vmem:[#allocation5 + $0x160] sm:$0xff]
    %v175 = vld [vmem:[#allocation5 + $0x168] sm:$0xff]
    %v176 = vld [vmem:[#allocation5 + $0x170] sm:$0xff]
    %v177 = vld [vmem:[#allocation5 + $0x178] sm:$0xff]
    %v178 = vld [vmem:[#allocation5 + $0x180] sm:$0xff]
    %v179 = vld [vmem:[#allocation5 + $0x188] sm:$0xff]
    %v180 = vld [vmem:[#allocation5 + $0x190] sm:$0xff]
    %v181 = vld [vmem:[#allocation5 + $0x198] sm:$0xff]
    %v182 = vld [vmem:[#allocation5 + $0x1a0] sm:$0xff]
    %v183 = vld [vmem:[#allocation5 + $0x1a8] sm:$0xff]
    %v184 = vld [vmem:[#allocation5 + $0x1b0] sm:$0xff]
    %v185 = vld [vmem:[#allocation5 + $0x1b8] sm:$0xff]
    %v186 = vld [vmem:[#allocation5 + $0x1c0] sm:$0xff]
    %v187 = vld [vmem:[#allocation5 + $0x1c8] sm:$0xff]
    %v188 = vld [vmem:[#allocation5 + $0x1d0] sm:$0xff]
    %v189 = vld [vmem:[#allocation5 + $0x1d8] sm:$0xff]
    %v190 = vld [vmem:[#allocation5 + $0x1e0] sm:$0xff]
    %v191 = vld [vmem:[#allocation5 + $0x1e8] sm:$0xff]
    %v192 = vld [vmem:[#allocation5 + $0x1f0] sm:$0xff]
    %v193 = vld [vmem:[#allocation5 + $0x1f8] sm:$0xff]
    %v194 = vld [vmem:[#allocation7] sm:$0xf]
    %v196 = vperm.slane %v194, 0
    %v197 = vperm.slane %v194, 1
    %v198 = vperm.slane %v194, 2
    %v199 = vperm.slane %v194, 3
    %v205 = vunpack.c.l.b16 %v129
    %v206 = vunpack.c.h.b16 %v129
    %v207 = vpack.c.b16 %v205, %v205
    %v208 = vpack.c.b16 %v206, %v206
    %v275 = vunpack.c.l.b16 %v130
    %v276 = vunpack.c.h.b16 %v130
    %v277 = vunpack.c.l.b16 %v131
    %v278 = vunpack.c.h.b16 %v131
    %v279 = vunpack.c.l.b16 %v132
    %v280 = vunpack.c.h.b16 %v132
    %v281 = vunpack.c.l.b16 %v133
    %v282 = vunpack.c.h.b16 %v133
    %v283 = vunpack.c.l.b16 %v134
    %v284 = vunpack.c.h.b16 %v134
    %v285 = vunpack.c.l.b16 %v135
    %v286 = vunpack.c.h.b16 %v135
    %v287 = vunpack.c.l.b16 %v136
    %v288 = vunpack.c.h.b16 %v136
    %v289 = vunpack.c.l.b16 %v137
    %v290 = vunpack.c.h.b16 %v137
    %v291 = vunpack.c.l.b16 %v138
    %v292 = vunpack.c.h.b16 %v138
    %v293 = vunpack.c.l.b16 %v139
    %v294 = vunpack.c.h.b16 %v139
    %v295 = vunpack.c.l.b16 %v140
    %v296 = vunpack.c.h.b16 %v140
    %v297 = vunpack.c.l.b16 %v141
    %v298 = vunpack.c.h.b16 %v141
    %v299 = vunpack.c.l.b16 %v142
    %v300 = vunpack.c.h.b16 %v142
    %v301 = vunpack.c.l.b16 %v143
    %v302 = vunpack.c.h.b16 %v143
    %v303 = vunpack.c.l.b16 %v144
    %v304 = vunpack.c.h.b16 %v144
    %v305 = vunpack.c.l.b16 %v145
    %v306 = vunpack.c.h.b16 %v145
    %v307 = vunpack.c.l.b16 %v146
    %v308 = vunpack.c.h.b16 %v146
    %v309 = vunpack.c.l.b16 %v147
    %v310 = vunpack.c.h.b16 %v147
    %v311 = vunpack.c.l.b16 %v148
    %v312 = vunpack.c.h.b16 %v148
    %v313 = vunpack.c.l.b16 %v149
    %v314 = vunpack.c.h.b16 %v149
    %v315 = vunpack.c.l.b16 %v150
    %v316 = vunpack.c.h.b16 %v150
    %v317 = vunpack.c.l.b16 %v151
    %v318 = vunpack.c.h.b16 %v151
    %v319 = vunpack.c.l.b16 %v152
    %v320 = vunpack.c.h.b16 %v152
    %v321 = vunpack.c.l.b16 %v153
    %v322 = vunpack.c.h.b16 %v153
    %v323 = vunpack.c.l.b16 %v154
    %v324 = vunpack.c.h.b16 %v154
    %v325 = vunpack.c.l.b16 %v155
    %v326 = vunpack.c.h.b16 %v155
    %v327 = vunpack.c.l.b16 %v156
    %v328 = vunpack.c.h.b16 %v156
    %v329 = vunpack.c.l.b16 %v157
    %v330 = vunpack.c.h.b16 %v157
    %v331 = vunpack.c.l.b16 %v158
    %v332 = vunpack.c.h.b16 %v158
    %v333 = vunpack.c.l.b16 %v159
    %v334 = vunpack.c.h.b16 %v159
    %v335 = vunpack.c.l.b16 %v160
    %v336 = vunpack.c.h.b16 %v160
    %v337 = vunpack.c.l.b16 %v161
    %v338 = vunpack.c.h.b16 %v161
    %v339 = vunpack.c.l.b16 %v162
    %v340 = vunpack.c.h.b16 %v162
    %v341 = vunpack.c.l.b16 %v163
    %v342 = vunpack.c.h.b16 %v163
    %v343 = vunpack.c.l.b16 %v164
    %v344 = vunpack.c.h.b16 %v164
    %v345 = vunpack.c.l.b16 %v165
    %v346 = vunpack.c.h.b16 %v165
    %v347 = vunpack.c.l.b16 %v166
    %v348 = vunpack.c.h.b16 %v166
    %v349 = vunpack.c.l.b16 %v167
    %v350 = vunpack.c.h.b16 %v167
    %v351 = vunpack.c.l.b16 %v168
    %v352 = vunpack.c.h.b16 %v168
    %v353 = vunpack.c.l.b16 %v169
    %v354 = vunpack.c.h.b16 %v169
    %v355 = vunpack.c.l.b16 %v170
    %v356 = vunpack.c.h.b16 %v170
    %v357 = vunpack.c.l.b16 %v171
    %v358 = vunpack.c.h.b16 %v171
    %v359 = vunpack.c.l.b16 %v172
    %v360 = vunpack.c.h.b16 %v172
    %v361 = vunpack.c.l.b16 %v173
    %v362 = vunpack.c.h.b16 %v173
    %v363 = vunpack.c.l.b16 %v174
    %v364 = vunpack.c.h.b16 %v174
    %v365 = vunpack.c.l.b16 %v175
    %v366 = vunpack.c.h.b16 %v175
    %v367 = vunpack.c.l.b16 %v176
    %v368 = vunpack.c.h.b16 %v176
    %v369 = vunpack.c.l.b16 %v177
    %v370 = vunpack.c.h.b16 %v177
    %v371 = vunpack.c.l.b16 %v178
    %v372 = vunpack.c.h.b16 %v178
    %v373 = vunpack.c.l.b16 %v179
    %v374 = vunpack.c.h.b16 %v179
    %v375 = vunpack.c.l.b16 %v180
    %v376 = vunpack.c.h.b16 %v180
    %v377 = vunpack.c.l.b16 %v181
    %v378 = vunpack.c.h.b16 %v181
    %v379 = vunpack.c.l.b16 %v182
    %v380 = vunpack.c.h.b16 %v182
    %v381 = vunpack.c.l.b16 %v183
    %v382 = vunpack.c.h.b16 %v183
    %v383 = vunpack.c.l.b16 %v184
    %v384 = vunpack.c.h.b16 %v184
    %v385 = vunpack.c.l.b16 %v185
    %v386 = vunpack.c.h.b16 %v185
    %v387 = vunpack.c.l.b16 %v186
    %v388 = vunpack.c.h.b16 %v186
    %v389 = vunpack.c.l.b16 %v187
    %v390 = vunpack.c.h.b16 %v187
    %v391 = vunpack.c.l.b16 %v188
    %v392 = vunpack.c.h.b16 %v188
    %v393 = vunpack.c.l.b16 %v189
    %v394 = vunpack.c.h.b16 %v189
    %v395 = vunpack.c.l.b16 %v190
    %v396 = vunpack.c.h.b16 %v190
    %v397 = vunpack.c.l.b16 %v191
    %v398 = vunpack.c.h.b16 %v191
    %v399 = vunpack.c.l.b16 %v192
    %v400 = vunpack.c.h.b16 %v192
    %v401 = vunpack.c.l.b16 %v193
    %v402 = vunpack.c.h.b16 %v193
    %v403 = vpack.c.b16 %v279, %v275
    %v404 = vpack.c.b16 %v280, %v276
    %v405 = vpack.c.b16 %v281, %v277
    %v406 = vpack.c.b16 %v282, %v278
    %v407 = vpack.c.b16 %v287, %v283
    %v408 = vpack.c.b16 %v288, %v284
    %v409 = vpack.c.b16 %v289, %v285
    %v410 = vpack.c.b16 %v290, %v286
    %v411 = vpack.c.b16 %v295, %v291
    %v412 = vpack.c.b16 %v296, %v292
    %v413 = vpack.c.b16 %v297, %v293
    %v414 = vpack.c.b16 %v298, %v294
    %v415 = vpack.c.b16 %v303, %v299
    %v416 = vpack.c.b16 %v304, %v300
    %v417 = vpack.c.b16 %v305, %v301
    %v418 = vpack.c.b16 %v306, %v302
    %v419 = vpack.c.b16 %v311, %v307
    %v420 = vpack.c.b16 %v312, %v308
    %v421 = vpack.c.b16 %v313, %v309
    %v422 = vpack.c.b16 %v314, %v310
    %v423 = vpack.c.b16 %v319, %v315
    %v424 = vpack.c.b16 %v320, %v316
    %v425 = vpack.c.b16 %v321, %v317
    %v426 = vpack.c.b16 %v322, %v318
    %v427 = vpack.c.b16 %v327, %v323
    %v428 = vpack.c.b16 %v328, %v324
    %v429 = vpack.c.b16 %v329, %v325
    %v430 = vpack.c.b16 %v330, %v326
    %v431 = vpack.c.b16 %v335, %v331
    %v432 = vpack.c.b16 %v336, %v332
    %v433 = vpack.c.b16 %v337, %v333
    %v434 = vpack.c.b16 %v338, %v334
    %v435 = vpack.c.b16 %v343, %v339
    %v436 = vpack.c.b16 %v344, %v340
    %v437 = vpack.c.b16 %v345, %v341
    %v438 = vpack.c.b16 %v346, %v342
    %v439 = vpack.c.b16 %v351, %v347
    %v440 = vpack.c.b16 %v352, %v348
    %v441 = vpack.c.b16 %v353, %v349
    %v442 = vpack.c.b16 %v354, %v350
    %v443 = vpack.c.b16 %v359, %v355
    %v444 = vpack.c.b16 %v360, %v356
    %v445 = vpack.c.b16 %v361, %v357
    %v446 = vpack.c.b16 %v362, %v358
    %v447 = vpack.c.b16 %v367, %v363
    %v448 = vpack.c.b16 %v368, %v364
    %v449 = vpack.c.b16 %v369, %v365
    %v450 = vpack.c.b16 %v370, %v366
    %v451 = vpack.c.b16 %v375, %v371
    %v452 = vpack.c.b16 %v376, %v372
    %v453 = vpack.c.b16 %v377, %v373
    %v454 = vpack.c.b16 %v378, %v374
    %v455 = vpack.c.b16 %v383, %v379
    %v456 = vpack.c.b16 %v384, %v380
    %v457 = vpack.c.b16 %v385, %v381
    %v458 = vpack.c.b16 %v386, %v382
    %v459 = vpack.c.b16 %v391, %v387
    %v460 = vpack.c.b16 %v392, %v388
    %v461 = vpack.c.b16 %v393, %v389
    %v462 = vpack.c.b16 %v394, %v390
    %v463 = vpack.c.b16 %v399, %v395
    %v464 = vpack.c.b16 %v400, %v396
    %v465 = vpack.c.b16 %v401, %v397
    %v466 = vpack.c.b16 %v402, %v398
    %531 = vmatpush.bf16.msra.mxu0 %v431
    %532 = vmatpush.bf16.msra.mxu0 %v427
    %533 = vmatpush.bf16.msra.mxu0 %v423
    %534 = vmatpush.bf16.msra.mxu0 %v419
    %535 = vmatpush.bf16.msra.mxu0 %v415
    %536 = vmatpush.bf16.msra.mxu0 %v411
    %537 = vmatpush.bf16.msra.mxu0 %v407
    %538 = vmatpush.bf16.msra.mxu0 %v403
    %539 = vmatmul.bf16.gmra.mxu0 %v207
    %v540 = vpop.f32.mrf.mxu0
    %v541 = vadd.f32 %v196, %v540
    %v542 = vpop.f32.mrf.mxu0
    %543 = vdwg.mxu0
    %544 = vmatpush.bf16.msra.mxu0 %v463
    %545 = vmatpush.bf16.msra.mxu0 %v459
    %546 = vmatpush.bf16.msra.mxu0 %v455
    %547 = vmatpush.bf16.msra.mxu0 %v451
    %548 = vmatpush.bf16.msra.mxu0 %v447
    %549 = vmatpush.bf16.msra.mxu0 %v443
    %550 = vmatpush.bf16.msra.mxu0 %v439
    %551 = vmatpush.bf16.msra.mxu0 %v435
    %552 = vmatmul.bf16.gmra.mxu0 %v208
    %v553 = vpop.f32.mrf.mxu0
    %v554 = vadd.f32 %v541, %v553
    %v555 = vpop.f32.mrf.mxu0
    %556 = vdwg.mxu0
    %557 = vmatpush.bf16.msra.mxu0 %v432
    %558 = vmatpush.bf16.msra.mxu0 %v428
    %559 = vmatpush.bf16.msra.mxu0 %v424
    %560 = vmatpush.bf16.msra.mxu0 %v420
    %561 = vmatpush.bf16.msra.mxu0 %v416
    %562 = vmatpush.bf16.msra.mxu0 %v412
    %563 = vmatpush.bf16.msra.mxu0 %v408
    %564 = vmatpush.bf16.msra.mxu0 %v404
    %565 = vmatmul.bf16.gmra.mxu0 %v207
    %v566 = vpop.f32.mrf.mxu0
    %v567 = vadd.f32 %v197, %v566
    %v568 = vpop.f32.mrf.mxu0
    %569 = vdwg.mxu0
    %570 = vmatpush.bf16.msra.mxu0 %v464
    %571 = vmatpush.bf16.msra.mxu0 %v460
    %572 = vmatpush.bf16.msra.mxu0 %v456
    %573 = vmatpush.bf16.msra.mxu0 %v452
    %574 = vmatpush.bf16.msra.mxu0 %v448
    %575 = vmatpush.bf16.msra.mxu0 %v444
    %576 = vmatpush.bf16.msra.mxu0 %v440
    %577 = vmatpush.bf16.msra.mxu0 %v436
    %578 = vmatmul.bf16.gmra.mxu0 %v208
    %v579 = vpop.f32.mrf.mxu0
    %v580 = vadd.f32 %v567, %v579
    %v581 = vpop.f32.mrf.mxu0
    %582 = vdwg.mxu0
    %583 = vmatpush.bf16.msra.mxu0 %v433
    %584 = vmatpush.bf16.msra.mxu0 %v429
    %585 = vmatpush.bf16.msra.mxu0 %v425
    %586 = vmatpush.bf16.msra.mxu0 %v421
    %587 = vmatpush.bf16.msra.mxu0 %v417
    %588 = vmatpush.bf16.msra.mxu0 %v413
    %589 = vmatpush.bf16.msra.mxu0 %v409
    %590 = vmatpush.bf16.msra.mxu0 %v405
    %591 = vmatmul.bf16.gmra.mxu0 %v207
    %v592 = vpop.f32.mrf.mxu0
    %v593 = vadd.f32 %v198, %v592
    %v594 = vpop.f32.mrf.mxu0
    %595 = vdwg.mxu0
    %596 = vmatpush.bf16.msra.mxu0 %v465
    %597 = vmatpush.bf16.msra.mxu0 %v461
    %598 = vmatpush.bf16.msra.mxu0 %v457
    %599 = vmatpush.bf16.msra.mxu0 %v453
    %600 = vmatpush.bf16.msra.mxu0 %v449
    %601 = vmatpush.bf16.msra.mxu0 %v445
    %602 = vmatpush.bf16.msra.mxu0 %v441
    %603 = vmatpush.bf16.msra.mxu0 %v437
    %604 = vmatmul.bf16.gmra.mxu0 %v208
    %v605 = vpop.f32.mrf.mxu0
    %v606 = vadd.f32 %v593, %v605
    %v607 = vpop.f32.mrf.mxu0
    %608 = vdwg.mxu0
    %609 = vmatpush.bf16.msra.mxu0 %v434
    %610 = vmatpush.bf16.msra.mxu0 %v430
    %611 = vmatpush.bf16.msra.mxu0 %v426
    %612 = vmatpush.bf16.msra.mxu0 %v422
    %613 = vmatpush.bf16.msra.mxu0 %v418
    %614 = vmatpush.bf16.msra.mxu0 %v414
    %615 = vmatpush.bf16.msra.mxu0 %v410
    %616 = vmatpush.bf16.msra.mxu0 %v406
    %617 = vmatmul.bf16.gmra.mxu0 %v207
    %v618 = vpop.f32.mrf.mxu0
    %v619 = vadd.f32 %v199, %v618
    %v620 = vpop.f32.mrf.mxu0
    %621 = vdwg.mxu0
    %622 = vmatpush.bf16.msra.mxu0 %v466
    %623 = vmatpush.bf16.msra.mxu0 %v462
    %624 = vmatpush.bf16.msra.mxu0 %v458
    %625 = vmatpush.bf16.msra.mxu0 %v454
    %626 = vmatpush.bf16.msra.mxu0 %v450
    %627 = vmatpush.bf16.msra.mxu0 %v446
    %628 = vmatpush.bf16.msra.mxu0 %v442
    %629 = vmatpush.bf16.msra.mxu0 %v438
    %630 = vmatmul.bf16.gmra.mxu0 %v208
    %v631 = vpop.f32.mrf.mxu0
    %v632 = vadd.f32 %v619, %v631
    %v633 = vpop.f32.mrf.mxu0
    %634 = vdwg.mxu0
    %v635 = vld [vmem:[#allocation8] sm:$0xf]
    %v636 = vld [vmem:[#allocation11] sm:$0xf]
    %v637 = vadd.f32 %v636, 1e-05
    %v638 = vrsqrt.pop %v637
    %v639 = vmul.f32 %v638, %v637
    %v640 = vmul.f32 %v639, %v638
    %v641 = vmul.f32 0.5, %v640
    %v642 = vsub.f32 1.5, %v641
    %v643 = vmul.f32 %v638, %v642
    %vm644 = vweird.f32 %v637
    %vm645 = vweird.f32 %v638
    %vm646 = vmor %vm644, %vm645
    %v647 = vsel %vm646, %v638, %v643
    %v648 = vmul.f32 %v635, %v647
    %v649 = vld [vmem:[#allocation10] sm:$0xf]
    %v650 = vld [vmem:[%s5] sm:$0xf]
    %v651 = vmul.f32 %v650, %v648
    %v652 = vsub.f32 %v649, %v651
    %v654 = vperm.slane %v648, 0
    %v655 = vperm.slane %v648, 1
    %v656 = vperm.slane %v648, 2
    %v657 = vperm.slane %v648, 3
    %v662 = vmul.f32 %v554, %v654
    %v663 = vmul.f32 %v580, %v655
    %v664 = vmul.f32 %v606, %v656
    %v665 = vmul.f32 %v632, %v657
    %v667 = vperm.slane %v652, 0
    %v668 = vperm.slane %v652, 1
    %v669 = vperm.slane %v652, 2
    %v670 = vperm.slane %v652, 3
    %v675 = vadd.f32 %v662, %v667
    %v676 = vadd.f32 %v663, %v668
    %v677 = vadd.f32 %v664, %v669
    %v678 = vadd.f32 %v665, %v670
    %vm679 = vcmp.ge.f32.partialorder %v675, 0.0
    %vm680 = vcmp.ge.f32.partialorder %v676, 0.0
    %vm681 = vcmp.ge.f32.partialorder %v677, 0.0
    %vm682 = vcmp.ge.f32.partialorder %v678, 0.0
    %v683 = vmul.f32 %v675, 0.01
    %v684 = vmul.f32 %v676, 0.01
    %v685 = vmul.f32 %v677, 0.01
    %v686 = vmul.f32 %v678, 0.01
    %v687 = vsel %vm679, %v675, %v683
    %v688 = vsel %vm680, %v676, %v684
    %v689 = vsel %vm681, %v677, %v685
    %v690 = vsel %vm682, %v678, %v686
    %v691 = vpack.c.bf16 %v687, %v687
    %v692 = vpack.c.bf16 %v688, %v688
    %v693 = vpack.c.bf16 %v689, %v689
    %v694 = vpack.c.bf16 %v690, %v690
    %v695 = vld [vmem:[#allocation13] sm:$0xf]
    %v696 = vld [vmem:[#allocation13 + $0x4] sm:$0xf]
    %v697 = vld [vmem:[#allocation13 + $0x8] sm:$0xf]
    %v698 = vld [vmem:[#allocation13 + $0xc] sm:$0xf]
    %v699 = vld [vmem:[#allocation13 + $0x10] sm:$0xf]
    %v700 = vld [vmem:[#allocation13 + $0x14] sm:$0xf]
    %v701 = vld [vmem:[#allocation13 + $0x18] sm:$0xf]
    %v702 = vld [vmem:[#allocation13 + $0x1c] sm:$0xf]
    %v703 = vld [vmem:[#allocation13 + $0x20] sm:$0xf]
    %v704 = vld [vmem:[#allocation13 + $0x24] sm:$0xf]
    %v705 = vld [vmem:[#allocation13 + $0x28] sm:$0xf]
    %v706 = vld [vmem:[#allocation13 + $0x2c] sm:$0xf]
    %v707 = vld [vmem:[#allocation13 + $0x30] sm:$0xf]
    %v708 = vld [vmem:[#allocation13 + $0x34] sm:$0xf]
    %v709 = vld [vmem:[#allocation13 + $0x38] sm:$0xf]
    %v710 = vld [vmem:[#allocation13 + $0x3c] sm:$0xf]
    %v711 = vld [vmem:[#allocation13 + $0x40] sm:$0xf]
    %v712 = vld [vmem:[#allocation13 + $0x44] sm:$0xf]
    %v713 = vld [vmem:[#allocation13 + $0x48] sm:$0xf]
    %v714 = vld [vmem:[#allocation13 + $0x4c] sm:$0xf]
    %v715 = vld [vmem:[#allocation13 + $0x50] sm:$0xf]
    %v716 = vld [vmem:[#allocation13 + $0x54] sm:$0xf]
    %v717 = vld [vmem:[#allocation13 + $0x58] sm:$0xf]
    %v718 = vld [vmem:[#allocation13 + $0x5c] sm:$0xf]
    %v719 = vld [vmem:[#allocation13 + $0x60] sm:$0xf]
    %v720 = vld [vmem:[#allocation13 + $0x64] sm:$0xf]
    %v721 = vld [vmem:[#allocation13 + $0x68] sm:$0xf]
    %v722 = vld [vmem:[#allocation13 + $0x6c] sm:$0xf]
    %v723 = vld [vmem:[#allocation13 + $0x70] sm:$0xf]
    %v724 = vld [vmem:[#allocation13 + $0x74] sm:$0xf]
    %v725 = vld [vmem:[#allocation13 + $0x78] sm:$0xf]
    %v726 = vld [vmem:[#allocation13 + $0x7c] sm:$0xf]
    %v727 = vld [vmem:[#allocation13 + $0x80] sm:$0xf]
    %v728 = vld [vmem:[#allocation13 + $0x84] sm:$0xf]
    %v729 = vld [vmem:[#allocation13 + $0x88] sm:$0xf]
    %v730 = vld [vmem:[#allocation13 + $0x8c] sm:$0xf]
    %v731 = vld [vmem:[#allocation13 + $0x90] sm:$0xf]
    %v732 = vld [vmem:[#allocation13 + $0x94] sm:$0xf]
    %v733 = vld [vmem:[#allocation13 + $0x98] sm:$0xf]
    %v734 = vld [vmem:[#allocation13 + $0x9c] sm:$0xf]
    %v735 = vld [vmem:[#allocation13 + $0xa0] sm:$0xf]
    %v736 = vld [vmem:[#allocation13 + $0xa4] sm:$0xf]
    %v737 = vld [vmem:[#allocation13 + $0xa8] sm:$0xf]
    %v738 = vld [vmem:[#allocation13 + $0xac] sm:$0xf]
    %v739 = vld [vmem:[#allocation13 + $0xb0] sm:$0xf]
    %v740 = vld [vmem:[#allocation13 + $0xb4] sm:$0xf]
    %v741 = vld [vmem:[#allocation13 + $0xb8] sm:$0xf]
    %v742 = vld [vmem:[#allocation13 + $0xbc] sm:$0xf]
    %v743 = vld [vmem:[#allocation13 + $0xc0] sm:$0xf]
    %v744 = vld [vmem:[#allocation13 + $0xc4] sm:$0xf]
    %v745 = vld [vmem:[#allocation13 + $0xc8] sm:$0xf]
    %v746 = vld [vmem:[#allocation13 + $0xcc] sm:$0xf]
    %v747 = vld [vmem:[#allocation13 + $0xd0] sm:$0xf]
    %v748 = vld [vmem:[#allocation13 + $0xd4] sm:$0xf]
    %v749 = vld [vmem:[#allocation13 + $0xd8] sm:$0xf]
    %v750 = vld [vmem:[#allocation13 + $0xdc] sm:$0xf]
    %v751 = vld [vmem:[#allocation13 + $0xe0] sm:$0xf]
    %v752 = vld [vmem:[#allocation13 + $0xe4] sm:$0xf]
    %v753 = vld [vmem:[#allocation13 + $0xe8] sm:$0xf]
    %v754 = vld [vmem:[#allocation13 + $0xec] sm:$0xf]
    %v755 = vld [vmem:[#allocation13 + $0xf0] sm:$0xf]
    %v756 = vld [vmem:[#allocation13 + $0xf4] sm:$0xf]
    %v757 = vld [vmem:[#allocation13 + $0xf8] sm:$0xf]
    %v758 = vld [vmem:[#allocation13 + $0xfc] sm:$0xf]
    %v823 = vunpack.c.l.b16 %v695
    %v824 = vunpack.c.l.b16 %v696
    %v825 = vunpack.c.l.b16 %v697
    %v826 = vunpack.c.l.b16 %v698
    %v827 = vunpack.c.l.b16 %v699
    %v828 = vunpack.c.l.b16 %v700
    %v829 = vunpack.c.l.b16 %v701
    %v830 = vunpack.c.l.b16 %v702
    %v831 = vunpack.c.l.b16 %v703
    %v832 = vunpack.c.l.b16 %v704
    %v833 = vunpack.c.l.b16 %v705
    %v834 = vunpack.c.l.b16 %v706
    %v835 = vunpack.c.l.b16 %v707
    %v836 = vunpack.c.l.b16 %v708
    %v837 = vunpack.c.l.b16 %v709
    %v838 = vunpack.c.l.b16 %v710
    %v839 = vunpack.c.l.b16 %v711
    %v840 = vunpack.c.l.b16 %v712
    %v841 = vunpack.c.l.b16 %v713
    %v842 = vunpack.c.l.b16 %v714
    %v843 = vunpack.c.l.b16 %v715
    %v844 = vunpack.c.l.b16 %v716
    %v845 = vunpack.c.l.b16 %v717
    %v846 = vunpack.c.l.b16 %v718
    %v847 = vunpack.c.l.b16 %v719
    %v848 = vunpack.c.l.b16 %v720
    %v849 = vunpack.c.l.b16 %v721
    %v850 = vunpack.c.l.b16 %v722
    %v851 = vunpack.c.l.b16 %v723
    %v852 = vunpack.c.l.b16 %v724
    %v853 = vunpack.c.l.b16 %v725
    %v854 = vunpack.c.l.b16 %v726
    %v855 = vunpack.c.l.b16 %v727
    %v856 = vunpack.c.l.b16 %v728
    %v857 = vunpack.c.l.b16 %v729
    %v858 = vunpack.c.l.b16 %v730
    %v859 = vunpack.c.l.b16 %v731
    %v860 = vunpack.c.l.b16 %v732
    %v861 = vunpack.c.l.b16 %v733
    %v862 = vunpack.c.l.b16 %v734
    %v863 = vunpack.c.l.b16 %v735
    %v864 = vunpack.c.l.b16 %v736
    %v865 = vunpack.c.l.b16 %v737
    %v866 = vunpack.c.l.b16 %v738
    %v867 = vunpack.c.l.b16 %v739
    %v868 = vunpack.c.l.b16 %v740
    %v869 = vunpack.c.l.b16 %v741
    %v870 = vunpack.c.l.b16 %v742
    %v871 = vunpack.c.l.b16 %v743
    %v872 = vunpack.c.l.b16 %v744
    %v873 = vunpack.c.l.b16 %v745
    %v874 = vunpack.c.l.b16 %v746
    %v875 = vunpack.c.l.b16 %v747
    %v876 = vunpack.c.l.b16 %v748
    %v877 = vunpack.c.l.b16 %v749
    %v878 = vunpack.c.l.b16 %v750
    %v879 = vunpack.c.l.b16 %v751
    %v880 = vunpack.c.l.b16 %v752
    %v881 = vunpack.c.l.b16 %v753
    %v882 = vunpack.c.l.b16 %v754
    %v883 = vunpack.c.l.b16 %v755
    %v884 = vunpack.c.l.b16 %v756
    %v885 = vunpack.c.l.b16 %v757
    %v886 = vunpack.c.l.b16 %v758
    %v887 = vpack.c.b16 %v824, %v823
    %v888 = vpack.c.b16 %v826, %v825
    %v889 = vpack.c.b16 %v828, %v827
    %v890 = vpack.c.b16 %v830, %v829
    %v891 = vpack.c.b16 %v832, %v831
    %v892 = vpack.c.b16 %v834, %v833
    %v893 = vpack.c.b16 %v836, %v835
    %v894 = vpack.c.b16 %v838, %v837
    %v895 = vpack.c.b16 %v840, %v839
    %v896 = vpack.c.b16 %v842, %v841
    %v897 = vpack.c.b16 %v844, %v843
    %v898 = vpack.c.b16 %v846, %v845
    %v899 = vpack.c.b16 %v848, %v847
    %v900 = vpack.c.b16 %v850, %v849
    %v901 = vpack.c.b16 %v852, %v851
    %v902 = vpack.c.b16 %v854, %v853
    %v903 = vpack.c.b16 %v856, %v855
    %v904 = vpack.c.b16 %v858, %v857
    %v905 = vpack.c.b16 %v860, %v859
    %v906 = vpack.c.b16 %v862, %v861
    %v907 = vpack.c.b16 %v864, %v863
    %v908 = vpack.c.b16 %v866, %v865
    %v909 = vpack.c.b16 %v868, %v867
    %v910 = vpack.c.b16 %v870, %v869
    %v911 = vpack.c.b16 %v872, %v871
    %v912 = vpack.c.b16 %v874, %v873
    %v913 = vpack.c.b16 %v876, %v875
    %v914 = vpack.c.b16 %v878, %v877
    %v915 = vpack.c.b16 %v880, %v879
    %v916 = vpack.c.b16 %v882, %v881
    %v917 = vpack.c.b16 %v884, %v883
    %v918 = vpack.c.b16 %v886, %v885
    %951 = vmatpush.bf16.msra.mxu0 %v894
    %952 = vmatpush.bf16.msra.mxu0 %v893
    %953 = vmatpush.bf16.msra.mxu0 %v892
    %954 = vmatpush.bf16.msra.mxu0 %v891
    %955 = vmatpush.bf16.msra.mxu0 %v890
    %956 = vmatpush.bf16.msra.mxu0 %v889
    %957 = vmatpush.bf16.msra.mxu0 %v888
    %958 = vmatpush.bf16.msra.mxu0 %v887
    %959 = vmatmul.bf16.gmra.mxu0 %v691
    %v960 = vpop.f32.mrf.mxu0
    %v961 = vadd.f32 0.0, %v960
    %v962 = vpop.f32.mrf.mxu0
    %963 = vdwg.mxu0
    %964 = vmatpush.bf16.msra.mxu0 %v902
    %965 = vmatpush.bf16.msra.mxu0 %v901
    %966 = vmatpush.bf16.msra.mxu0 %v900
    %967 = vmatpush.bf16.msra.mxu0 %v899
    %968 = vmatpush.bf16.msra.mxu0 %v898
    %969 = vmatpush.bf16.msra.mxu0 %v897
    %970 = vmatpush.bf16.msra.mxu0 %v896
    %971 = vmatpush.bf16.msra.mxu0 %v895
    %972 = vmatmul.bf16.gmra.mxu0 %v692
    %v973 = vpop.f32.mrf.mxu0
    %v974 = vadd.f32 %v961, %v973
    %v975 = vpop.f32.mrf.mxu0
    %976 = vdwg.mxu0
    %977 = vmatpush.bf16.msra.mxu0 %v910
    %978 = vmatpush.bf16.msra.mxu0 %v909
    %979 = vmatpush.bf16.msra.mxu0 %v908
    %980 = vmatpush.bf16.msra.mxu0 %v907
    %981 = vmatpush.bf16.msra.mxu0 %v906
    %982 = vmatpush.bf16.msra.mxu0 %v905
    %983 = vmatpush.bf16.msra.mxu0 %v904
    %984 = vmatpush.bf16.msra.mxu0 %v903
    %985 = vmatmul.bf16.gmra.mxu0 %v693
    %v986 = vpop.f32.mrf.mxu0
    %v987 = vadd.f32 %v974, %v986
    %v988 = vpop.f32.mrf.mxu0
    %989 = vdwg.mxu0
    %990 = vmatpush.bf16.msra.mxu0 %v918
    %991 = vmatpush.bf16.msra.mxu0 %v917
    %992 = vmatpush.bf16.msra.mxu0 %v916
    %993 = vmatpush.bf16.msra.mxu0 %v915
    %994 = vmatpush.bf16.msra.mxu0 %v914
    %995 = vmatpush.bf16.msra.mxu0 %v913
    %996 = vmatpush.bf16.msra.mxu0 %v912
    %997 = vmatpush.bf16.msra.mxu0 %v911
    %998 = vmatmul.bf16.gmra.mxu0 %v694
    %v999 = vpop.f32.mrf.mxu0
    %v1000 = vadd.f32 %v987, %v999
    %v1001 = vpop.f32.mrf.mxu0
    %1002 = vdwg.mxu0
    %1003 = vst [vmem:[#allocation14] sm:$0xff] %v1000
    // Predicated region
    $region62: #{tpu_custom_call.1} parent=1 // pred_check
      _
    $region63: #{tpu_custom_call.1} parent=1 // pred_check_branch
      %1005 = sbr.rel (0) target = $region65
    $region64: #{tpu_custom_call.1} parent=1 // pred_region
      %1007 = vsyncadd [#allocation4], 0
      %s1009 = sshll.u32 [#allocation14], 4
      %s1010 = int_to_ptr.vmem [resolvable:$true] %s1009
      %s1011 = sshll.u32 %s8, 4
      %s1012 = int_to_ptr.hbm [resolvable:$true] %s1011
      %1014 = dma.vmem_to_hbm [thread:$0]  %s1010, 128, %s1012, [#allocation4]
    $region65: #{tpu_custom_call.1} parent=1 // pred_fallthru
      _
    // Predicated region
    $region66: #{tpu_custom_call.1} parent=1 // pred_check
      _
    $region67: #{tpu_custom_call.1} parent=1 // pred_check_branch
      %1016 = sbr.rel (0) target = $region69
    $region68: #{tpu_custom_call.1} parent=1 // pred_region
      %1018 = dma.done [#allocation4], 128
    $region69: #{tpu_custom_call.1} parent=1 // pred_fallthru
      _
    %1019 = vsyncpa [#allocation3], 1
    %1020 = vsyncpa [#allocation6], 1
    %1021 = vsyncpa [#allocation9], 1
    %1022 = vsyncpa [#allocation12], 1
    %1023 = vsyncpa [#allocation4], 1

</llo_original>
